<compile_context>
chip_gen: v6e
topology: v6e:2x2x1
jax: 0.10.0
libtpu: 0.0.40
codegen_flags: <defaults>
</compile_context>

<pallas_src>
import functools

import jax
import jax.numpy as jnp
import numpy as np
from jax import lax
from jax.experimental import pallas as pl
from jax.experimental.pallas import tpu as pltpu


def _merged_linear_kernel(mw_ref, x_ref, bm_ref, tvw_ref, wpre_hbm,
                          y_ref, y_acc, wpre_buf, wpre_sem,
                          *, tile_n, clamp_weights):
    """Grid = (D_out tiles [parallel], T [arbitrary, innermost])."""
    j = pl.program_id(0)
    t = pl.program_id(1)
    n_t = pl.num_programs(1)

    def wpre_copy():
        row0 = pl.multiple_of(j * tile_n, tile_n)
        return pltpu.make_async_copy(
            wpre_hbm.at[pl.ds(row0, tile_n), :], wpre_buf, wpre_sem)

    # --- init: seed accumulator with the merged bias, start W_pre tile DMA ---
    @pl.when(t == 0)
    def _init():
        # The pretrained tile DMA for this j is hidden behind the T streamed
        # task-vector steps and only waited at t == T-1.
        wpre_copy().start()
        y_acc[...] = jnp.broadcast_to(bm_ref[...].astype(jnp.float32),
                                      y_acc.shape)

    # --- merge_weights(): clamp(w_t, 0, 1)   (clamp_weights=True) -----------
    w_t = mw_ref[t]
    if clamp_weights:
        w_t = jnp.clip(w_t, 0.0, 1.0)
    w_t = w_t.astype(jnp.float32)

    # Task-vector matmul in the streamed dtype (pass bf16 tv_w to halve HBM
    # traffic); contraction on D_in of both operands -> Linear layout feeds
    # the MXU without a transpose; accumulation stays f32.
    x_tv = x_ref[...].astype(tvw_ref.dtype)
    y_acc[...] += w_t * lax.dot_general(
        x_tv, tvw_ref[...],
        dimension_numbers=(((1,), (1,)), ((), ())),
        preferred_element_type=jnp.float32)

    # --- finalize: add the pretrained contribution (kept in f32) and store --
    @pl.when(t == n_t - 1)
    def _finalize():
        wpre_copy().wait()
        y_acc[...] += lax.dot_general(
            x_ref[...], wpre_buf[...],
            dimension_numbers=(((1,), (1,)), ((), ())),
            preferred_element_type=jnp.float32)
        y_ref[...] = y_acc[...].astype(y_ref.dtype)


_VMEM_DATA_BUDGET = 34 * 1024 * 1024   # data buffers target; safe on v7x 64 MiB
_VMEM_LIMIT_CAP = 48 * 1024 * 1024
_VMEM_LIMIT_FLOOR = 32 * 1024 * 1024


def _vmem_footprint(tn, *, b, d_in, tv_itemsize, wpre_itemsize, x_itemsize,
                    out_itemsize):
    """Bytes of VMEM actually used per grid step for a given output tile TN."""
    return (2 * tn * d_in * tv_itemsize      # tv_w streamed tile, double buffer
            + 1 * tn * d_in * wpre_itemsize  # W_pre tile, single-buffer scratch
            + 2 * b * d_in * x_itemsize      # x resident (double buffered)
            + 2 * 1 * tn * 4                 # merged-bias tile
            + 2 * b * tn * out_itemsize      # output tile, double buffer
            + b * tn * 4)                    # y accumulator scratch (f32)


def _choose_tile_n(d_out, budget, footprint_fn):
    """Largest lane-dense (multiple-of-128) divisor of d_out fitting `budget`,
    preferring >= 2 tiles on the parallel axis (v7x megacore)."""
    cands = [c for c in range(d_out, 127, -128)
             if c % 128 == 0 and d_out % c == 0]
    if not cands:
        cands = [d_out]
    multi = [c for c in cands if d_out // c >= 2]
    if multi:
        cands = multi
    for c in cands:
        if footprint_fn(c) <= budget:
            return c
    return cands[-1]


def task_wise_merged_linear(x, merge_weight, w_pre, b_pre, tv_w, tv_b,
                            *, clamp_weights=True, tile_n=None):
    """Forward of TaskWiseMergedModel specialized to a single nn.Linear.

      y = x @ (W_pre + sum_t clamp(w_t,0,1) * TV_w[t])^T
            + (b_pre + sum_t clamp(w_t,0,1) * TV_b[t])

    x:            [..., D_in]          (leading batch/seq dims are flattened)
    merge_weight: [T]
    w_pre:        [D_out, D_in]        (stays in its own dtype, e.g. f32)
    b_pre:        [D_out]
    tv_w:         [T, D_out, D_in]     (pass bf16 to halve HBM traffic)
    tv_b:         [T, D_out]
    """
    *lead, d_in = x.shape
    x2 = x.reshape(-1, d_in)
    b = x2.shape[0]
    t_tasks, d_out, _ = tv_w.shape
    out_dtype = x.dtype

    # Merged bias is tiny (T x D_out): do it on the XLA side once per call so
    # the kernel has no per-step bias DMAs.
    mw_f32 = merge_weight.astype(jnp.float32)
    mw_eff = jnp.clip(mw_f32, 0.0, 1.0) if clamp_weights else mw_f32
    b_merged = (b_pre.astype(jnp.float32)
                + jnp.einsum("t,to->o", mw_eff, tv_b.astype(jnp.float32))
                ).reshape(1, d_out)

    if t_tasks == 0:
        # No task vectors: merged model == pretrained model.
        y = (x2.astype(jnp.float32) @ w_pre.astype(jnp.float32).T
             + b_merged).astype(out_dtype)
        return y.reshape(*lead, d_out)

    # Pad D_out up to a lane-friendly multiple of 128 when needed (keeps the
    # stores lane-dense and the parallel axis well-formed).
    # TODO(synk): pad parameters once at merge time instead of per forward.
    pad = (-d_out) % 128
    if pad:
        w_pre = jnp.pad(w_pre, ((0, pad), (0, 0)))
        tv_w = jnp.pad(tv_w, ((0, 0), (0, pad), (0, 0)))
        b_merged = jnp.pad(b_merged, ((0, 0), (0, pad)))
    d_out_p = d_out + pad

    tv_isz = jnp.dtype(tv_w.dtype).itemsize
    wpre_isz = jnp.dtype(w_pre.dtype).itemsize
    x_isz = jnp.dtype(x2.dtype).itemsize
    out_isz = jnp.dtype(out_dtype).itemsize

    fp = functools.partial(_vmem_footprint, b=b, d_in=d_in,
                           tv_itemsize=tv_isz, wpre_itemsize=wpre_isz,
                           x_itemsize=x_isz, out_itemsize=out_isz)
    tn = tile_n if tile_n is not None else _choose_tile_n(
        d_out_p, _VMEM_DATA_BUDGET, fp)
    assert d_out_p % tn == 0, "padded D_out must be divisible by the tile"
    n_j = d_out_p // tn

    vmem_limit = int(min(_VMEM_LIMIT_CAP,
                         max(_VMEM_LIMIT_FLOOR, fp(tn) * 5 // 4)))

    grid_spec = pltpu.PrefetchScalarGridSpec(
        num_scalar_prefetch=1,  # merge_weight -> SMEM before the grid starts
        grid=(n_j, t_tasks),
        in_specs=[
            # x: constant block index across the whole grid (resident).
            pl.BlockSpec((b, d_in), lambda j, t, mw: (0, 0)),
            # merged bias tile: constant across t for a given j.
            pl.BlockSpec((1, tn), lambda j, t, mw: (0, j)),
            # task-vector tiles: streamed over t (the HBM-bound axis).
            pl.BlockSpec((pl.Squeezed(), tn, d_in), lambda j, t, mw: (t, j, 0)),
            # W_pre stays in HBM; its tile is fetched manually (single buffer).
            pl.BlockSpec(memory_space=pl.ANY),
        ],
        out_specs=pl.BlockSpec((b, tn), lambda j, t, mw: (0, j)),
        scratch_shapes=[
            pltpu.VMEM((b, tn), jnp.float32),       # y accumulator
            pltpu.VMEM((tn, d_in), w_pre.dtype),    # single-buffered W_pre tile
            pltpu.SemaphoreType.DMA(()),            # its DMA semaphore
        ],
    )

    cost = pl.CostEstimate(
        flops=2 * b * d_out_p * d_in * (t_tasks + 1),
        transcendentals=0,
        bytes_accessed=(t_tasks * d_out_p * d_in * tv_isz   # task vectors
                        + d_out_p * d_in * wpre_isz         # W_pre
                        + b * d_in * x_isz                  # x
                        + d_out_p * 4                       # merged bias
                        + b * d_out_p * out_isz),           # output
    )

    kernel = functools.partial(_merged_linear_kernel, tile_n=tn,
                               clamp_weights=clamp_weights)

    y = pl.pallas_call(
        kernel,
        grid_spec=grid_spec,
        out_shape=jax.ShapeDtypeStruct((b, d_out_p), out_dtype),
        compiler_params=pltpu.CompilerParams(
            dimension_semantics=("parallel", "arbitrary"),
            vmem_limit_bytes=vmem_limit),
        cost_estimate=cost,
    )(merge_weight, x2, b_merged, tv_w, w_pre)

    if pad:
        y = y[:, :d_out]
    return y.reshape(*lead, d_out)


def _reference(x, merge_weight, w_pre, b_pre, tv_w, tv_b):
    w = jnp.clip(merge_weight.astype(jnp.float32), 0.0, 1.0)
    w_merged = w_pre.astype(jnp.float32) + jnp.einsum(
        "t,toi->oi", w, tv_w.astype(jnp.float32),
        precision=lax.Precision.HIGHEST)
    b_merged = b_pre.astype(jnp.float32) + jnp.einsum(
        "t,to->o", w, tv_b.astype(jnp.float32),
        precision=lax.Precision.HIGHEST)
    return jnp.dot(x.astype(jnp.float32), w_merged.T,
                   precision=lax.Precision.HIGHEST) + b_merged


if __name__ == "__main__":
    # Small, lane-dense shapes; x has leading (batch, seq) dims that the
    # wrapper flattens into B = 2*4 = 8 MXU rows.
    B_lead, S, D_in, D_out, T = 2, 4, 256, 256, 4

    key = jax.random.PRNGKey(0)
    kx, kw, kb, ktw, ktb, km = jax.random.split(key, 6)

    x = jax.random.normal(kx, (B_lead, S, D_in), dtype=jnp.float32)
    # pretrained Linear params
    w_pre = jax.random.normal(kw, (D_out, D_in), dtype=jnp.float32) * 0.1
    b_pre = jax.random.normal(kb, (D_out,), dtype=jnp.float32) * 0.1
    # task vectors (finetuned - pretrained), stacked over tasks
    tv_w = jax.random.normal(ktw, (T, D_out, D_in), dtype=jnp.float32) * 0.05
    tv_b = jax.random.normal(ktb, (T, D_out), dtype=jnp.float32) * 0.05
    # task_wise_weight (values outside [0,1] to exercise clamping)
    merge_weight = jax.random.uniform(km, (T,), dtype=jnp.float32,
                                      minval=-0.5, maxval=1.5)

    x_flat = x.reshape(-1, D_in)

    # --- f32 path (W_pre and task vectors both f32) --------------------------
    y = task_wise_merged_linear(x, merge_weight, w_pre, b_pre, tv_w, tv_b)
    y = jax.block_until_ready(y)
    assert y.shape == (B_lead, S, D_out)
    y_ref = _reference(x_flat, merge_weight, w_pre, b_pre, tv_w, tv_b)
    np.testing.assert_allclose(np.asarray(y.reshape(-1, D_out)),
                               np.asarray(y_ref), rtol=5e-4, atol=5e-4)

    # --- bf16-streamed task vectors (primary HBM-bandwidth lever); W_pre and
    # the pretrained contribution stay in f32 inside the kernel --------------
    y_bf = task_wise_merged_linear(x, merge_weight, w_pre, b_pre,
                                   tv_w.astype(jnp.bfloat16), tv_b)
    y_bf = jax.block_until_ready(y_bf)
    y_ref_bf = _reference(x_flat, merge_weight, w_pre, b_pre,
                          tv_w.astype(jnp.bfloat16), tv_b)
    np.testing.assert_allclose(
        np.asarray(y_bf.reshape(-1, D_out), dtype=np.float32),
        np.asarray(y_ref_bf), rtol=5e-2, atol=5e-2)

    print("KERNEL_OK")
</pallas_src>

<mosaic_0001>
module attributes {stable_mosaic.version = 11 : i64} {
  func.func @_merged_linear_kernel(%arg0: i32, %arg1: i32, %arg2: memref<4xf32, #tpu.memory_space<smem>>, %arg3: memref<8x256xf32, #tpu.memory_space<vmem>>, %arg4: memref<1x128xf32, #tpu.memory_space<vmem>>, %arg5: memref<1x128x256xf32, #tpu.memory_space<vmem>>, %arg6: memref<256x256xf32, #tpu.memory_space<any>>, %arg7: memref<8x128xf32, #tpu.memory_space<vmem>>, %arg8: memref<8x128xf32, #tpu.memory_space<vmem>>, %arg9: memref<128x256xf32, #tpu.memory_space<vmem>>, %arg10: memref<!tpu.dma_semaphore, #tpu.memory_space<semaphore_mem>>) attributes {dimension_semantics = [#tpu.dimension_semantics<parallel>, #tpu.dimension_semantics<arbitrary>], iteration_bounds = array<i64: 2, 4>, scalar_prefetch = 1 : i64, scratch_operands = 3 : i64, tpu.core_type = #tpu.core_type<tc>, window_params = [{pipeline_mode = #tpu.pipeline_mode<synchronous>, transform_indices = @transform_0, window_bounds = array<i64: 8, 256>}, {transform_indices = @transform_1, window_bounds = array<i64: 1, 128>}, {transform_indices = @transform_2, window_bounds = array<i64: 1, 128, 256>}, {}, {transform_indices = @transform_4, window_bounds = array<i64: 8, 128>}]} {
    %c0_i32 = arith.constant 0 : i32
    %0 = arith.cmpi eq, %arg1, %c0_i32 : i32
    %1 = arith.extui %0 : i1 to i32
    %c0_i32_0 = arith.constant 0 : i32
    %2 = arith.cmpi ne, %1, %c0_i32_0 : i32
    scf.if %2 {
      %c128_i32 = arith.constant 128 : i32
      %19 = arith.muli %arg0, %c128_i32 : i32
      %20 = tpu.assume_multiple %19, 128 : i32
      %c0_i32_12 = arith.constant 0 : i32
      %21 = tpu.memref_slice %arg6[%20, %c0_i32_12] : memref<256x256xf32, #tpu.memory_space<any>> -> memref<128x256xf32, #tpu.memory_space<any>>
      tpu.enqueue_dma source(%21 : memref<128x256xf32, #tpu.memory_space<any>>) target(%arg9 : memref<128x256xf32, #tpu.memory_space<vmem>>) target_semaphore(%arg10 : memref<!tpu.dma_semaphore, #tpu.memory_space<semaphore_mem>>)
      %c0_13 = arith.constant 0 : index
      %c0_14 = arith.constant 0 : index
      %22 = vector.load %arg4[%c0_13, %c0_14] : memref<1x128xf32, #tpu.memory_space<vmem>>, vector<1x128xf32>
      %23 = vector.shape_cast %22 : vector<1x128xf32> to vector<1x128xf32>
      %24 = vector.broadcast %23 : vector<1x128xf32> to vector<8x128xf32>
      %c0_15 = arith.constant 0 : index
      %c0_16 = arith.constant 0 : index
      %25 = vector.load %arg8[%c0_15, %c0_16] : memref<8x128xf32, #tpu.memory_space<vmem>>, vector<8x128xf32>
      tpu.vector_store %arg8[%c0_15, %c0_16], %24 {strides = array<i32>} : memref<8x128xf32, #tpu.memory_space<vmem>>, vector<8x128xf32>,
    } else {
    }
    %3 = arith.index_cast %arg1 : i32 to index
    %4 = memref.load %arg2[%3] : memref<4xf32, #tpu.memory_space<smem>>
    %cst = arith.constant 0.000000e+00 : f32
    %cst_1 = arith.constant 1.000000e+00 : f32
    %5 = arith.maximumf %cst, %4 : f32
    %6 = arith.minimumf %cst_1, %5 : f32
    %c0 = arith.constant 0 : index
    %c0_2 = arith.constant 0 : index
    %7 = vector.load %arg3[%c0, %c0_2] : memref<8x256xf32, #tpu.memory_space<vmem>>, vector<8x256xf32>
    %c0_3 = arith.constant 0 : index
    %c0_4 = arith.constant 0 : index
    %8 = vector.load %arg8[%c0_3, %c0_4] : memref<8x128xf32, #tpu.memory_space<vmem>>, vector<8x128xf32>
    %c0_5 = arith.constant 0 : index
    %c0_6 = arith.constant 0 : index
    %c0_7 = arith.constant 0 : index
    %9 = vector.load %arg5[%c0_5, %c0_6, %c0_7] : memref<1x128x256xf32, #tpu.memory_space<vmem>>, vector<1x128x256xf32>
    %10 = vector.shape_cast %9 : vector<1x128x256xf32> to vector<128x256xf32>
    %cst_8 = arith.constant dense<0.000000e+00> : vector<8x128xf32>
    %11 = tpu.matmul %7, %10, %cst_8 {dimension_numbers = #tpu.dot_dimension_numbers<[1], [1], [0], [0], [0, 0, 1, 0], [], []>} : vector<8x256xf32>, vector<128x256xf32>, vector<8x128xf32> -> vector<8x128xf32>
    %12 = vector.broadcast %6 : f32 to vector<8x128xf32>
    %13 = arith.mulf %12, %11 : vector<8x128xf32>
    %14 = arith.addf %8, %13 : vector<8x128xf32>
    %c0_9 = arith.constant 0 : index
    %c0_10 = arith.constant 0 : index
    %15 = vector.load %arg8[%c0_9, %c0_10] : memref<8x128xf32, #tpu.memory_space<vmem>>, vector<8x128xf32>
    tpu.vector_store %arg8[%c0_9, %c0_10], %14 {strides = array<i32>} : memref<8x128xf32, #tpu.memory_space<vmem>>, vector<8x128xf32>,
    %c3_i32 = arith.constant 3 : i32
    %16 = arith.cmpi eq, %arg1, %c3_i32 : i32
    %17 = arith.extui %16 : i1 to i32
    %c0_i32_11 = arith.constant 0 : i32
    %18 = arith.cmpi ne, %17, %c0_i32_11 : i32
    scf.if %18 {
      %c128_i32 = arith.constant 128 : i32
      %19 = arith.muli %arg0, %c128_i32 : i32
      %20 = tpu.assume_multiple %19, 128 : i32
      %c0_i32_12 = arith.constant 0 : i32
      %21 = tpu.memref_slice %arg6[%20, %c0_i32_12] : memref<256x256xf32, #tpu.memory_space<any>> -> memref<128x256xf32, #tpu.memory_space<any>>
      tpu.wait_dma2 semaphore(%arg10 : memref<!tpu.dma_semaphore, #tpu.memory_space<semaphore_mem>>) src(%21 : memref<128x256xf32, #tpu.memory_space<any>>) dst(%arg9 : memref<128x256xf32, #tpu.memory_space<vmem>>)
      %c0_13 = arith.constant 0 : index
      %c0_14 = arith.constant 0 : index
      %22 = vector.load %arg8[%c0_13, %c0_14] : memref<8x128xf32, #tpu.memory_space<vmem>>, vector<8x128xf32>
      %c0_15 = arith.constant 0 : index
      %c0_16 = arith.constant 0 : index
      %23 = vector.load %arg3[%c0_15, %c0_16] : memref<8x256xf32, #tpu.memory_space<vmem>>, vector<8x256xf32>
      %c0_17 = arith.constant 0 : index
      %c0_18 = arith.constant 0 : index
      %24 = vector.load %arg9[%c0_17, %c0_18] : memref<128x256xf32, #tpu.memory_space<vmem>>, vector<128x256xf32>
      %cst_19 = arith.constant dense<0.000000e+00> : vector<8x128xf32>
      %25 = tpu.matmul %23, %24, %cst_19 {dimension_numbers = #tpu.dot_dimension_numbers<[1], [1], [0], [0], [0, 0, 1, 0], [], []>} : vector<8x256xf32>, vector<128x256xf32>, vector<8x128xf32> -> vector<8x128xf32>
      %26 = arith.addf %22, %25 : vector<8x128xf32>
      %c0_20 = arith.constant 0 : index
      %c0_21 = arith.constant 0 : index
      %27 = vector.load %arg8[%c0_20, %c0_21] : memref<8x128xf32, #tpu.memory_space<vmem>>, vector<8x128xf32>
      tpu.vector_store %arg8[%c0_20, %c0_21], %26 {strides = array<i32>} : memref<8x128xf32, #tpu.memory_space<vmem>>, vector<8x128xf32>,
      %c0_22 = arith.constant 0 : index
      %c0_23 = arith.constant 0 : index
      %28 = vector.load %arg8[%c0_22, %c0_23] : memref<8x128xf32, #tpu.memory_space<vmem>>, vector<8x128xf32>
      %c0_24 = arith.constant 0 : index
      %c0_25 = arith.constant 0 : index
      %29 = vector.load %arg7[%c0_24, %c0_25] : memref<8x128xf32, #tpu.memory_space<vmem>>, vector<8x128xf32>
      tpu.vector_store %arg7[%c0_24, %c0_25], %28 {strides = array<i32>} : memref<8x128xf32, #tpu.memory_space<vmem>>, vector<8x128xf32>,
    } else {
    }
    return
  }
  func.func @transform_0(%arg0: i32, %arg1: i32, %arg2: memref<4xf32, #tpu.memory_space<smem>>) -> (i32, i32) {
    %c0_i32 = arith.constant 0 : i32
    %c0_i32_0 = arith.constant 0 : i32
    %c0_i32_1 = arith.constant 0 : i32
    return %c0_i32, %c0_i32_0 : i32, i32
  }
  func.func @transform_1(%arg0: i32, %arg1: i32, %arg2: memref<4xf32, #tpu.memory_space<smem>>) -> (i32, i32) {
    %c0_i32 = arith.constant 0 : i32
    %c0_i32_0 = arith.constant 0 : i32
    return %c0_i32, %arg0 : i32, i32
  }
  func.func @transform_2(%arg0: i32, %arg1: i32, %arg2: memref<4xf32, #tpu.memory_space<smem>>) -> (i32, i32, i32) {
    %c0_i32 = arith.constant 0 : i32
    %c0_i32_0 = arith.constant 0 : i32
    return %arg1, %arg0, %c0_i32 : i32, i32, i32
  }
  func.func @transform_4(%arg0: i32, %arg1: i32, %arg2: memref<4xf32, #tpu.memory_space<smem>>) -> (i32, i32) {
    %c0_i32 = arith.constant 0 : i32
    %c0_i32_0 = arith.constant 0 : i32
    return %c0_i32, %arg0 : i32, i32
  }
}

</mosaic_0001>

<llo_original>
// kernel: tpu_custom_call.1
$region0: #{tpu_custom_call.1}
  #allocation0 [shape = 'u32[]', space=smem, size = 0x4, offset = 0x4, fixed_abs, tag = 'smem constant byte address 0x4 - core index']
  #allocation1 [shape = 'u32[144,128]{1,0:T(1,128)}', space=vmem, size = 0x12000, scoped, tag = 'internal scratch']
  #allocation2 [shape = 'f32[8,128]{1,0:T(8,128)}', space=vmem, size = 0x1000, scoped, tag = 'scratch operand']
  #allocation3 [shape = 'f32[128,256]{1,0:T(8,128)}', space=vmem, size = 0x20000, scoped, tag = 'scratch operand']
  #allocation4 [shape = 's32[1]{0}', space=sflag, size = 0x4, scoped, tag = 'scratch operand']
  #allocation5 [shape = 's32[1]{0}', space=sflag, size = 0x4, scoped, tag = 'scoped memory for tpu_custom_call.1']
  #allocation6 [shape = 'u8[512]{0}', space=smem, size = 0x200, scoped, tag = 'prefetched SMEM operand 0']
  #allocation13 [shape = 's32[]', space=sflag, size = 0x4, offset = 0, fixed_abs, tag = 'sflag constant byte address 0x0 - dummy sync flag']
  #allocation14 [shape = 's32[]', space=sflag, size = 0x4, offset = 0, fixed_abs, tag = 'sflag constant byte address 0x0 - dummy sync flag']
  #allocation15 [shape = 'u32[]', space=smem, size = 0x4, offset = 0x44, fixed_abs, tag = 'smem constant byte address 0x44 - assertion arg 0']
  #allocation16 [shape = 'u32[]', space=smem, size = 0x4, offset = 0x48, fixed_abs, tag = 'smem constant byte address 0x48 - assertion arg 1']
  %s0 = inlined_call_operand.hbm [shape: f32[4], index: 0, kind: input, shape index: {}]
  %s1 = inlined_call_operand.hbm [shape: f32[8,256], index: 1, kind: input, shape index: {}]
  %s2 = inlined_call_operand.vmem [shape: f32[1,256], index: 2, kind: input, shape index: {}]
  %s3 = inlined_call_operand.hbm [shape: f32[4,256,256], index: 3, kind: input, shape index: {}]
  %s4 = inlined_call_operand.hbm [shape: f32[256,256], index: 4, kind: input, shape index: {}]
  %s5 = inlined_call_operand.hbm [shape: f32[8,256], index: 5, kind: output, shape index: {}]
  %s6 = sld [smem:[#allocation0]]
  $region65: #{tpu_custom_call.1} parent=0
    _
  %s8 = ssub.s32 1, %s6
  %s9 = scalar_select 0, %s8, %s6
  %11 = dma.hbm_to_smem %s0, 16, [#allocation6], [#allocation5]
  %12 = dma.done [#allocation5], 16
  %13 = sfence
  $region1: #{tpu_custom_call.1} parent=0
    #allocation7 [shape = 'u8[8192]{0}', space=vmem, size = 0x2000, scoped, tag = 'input window, operand 1, single buffered']
    #allocation8 [shape = 's32[2]{0}', space=sflag, size = 0x8, scoped, tag = 'scoped memory for tpu_custom_call.1']
    #allocation9 [shape = 's32[2]{0}', space=sflag, size = 0x8, scoped, tag = 'scoped memory for tpu_custom_call.1']
    #allocation10 [shape = 'u8[262144]{0}', space=vmem, size = 0x40000, scoped, tag = 'input window, operand 3']
    #allocation11 [shape = 's32[2]{0}', space=sflag, size = 0x8, scoped, tag = 'scoped memory for tpu_custom_call.1']
    #allocation12 [shape = 'u8[8192]{0}', space=vmem, size = 0x2000, scoped, tag = 'output window, operand 0']
    %14 = vsyncpa [#allocation8], 0
    %15 = vsyncpa [#allocation11], 0
    %s16 = scalar_lea.sflag [#allocation11], 1
    %17 = vsyncpa %s16, 0
    %18 = vsyncpa [#allocation9], 0
    %s19 = scalar_lea.sflag [#allocation9], 1
    %20 = vsyncpa %s19, 0
    loop: start=0, step=1, limit=10
    $region2: #{tpu_custom_call.1} parent=1 // loop_pre_header
      _
    $region3: #{tpu_custom_call.1} parent=1 // loop_header
      %s22 = sphi 0, %s26
      %p23 = scmp.ge.s32.totalorder %s22, 10
      %s29 = sphi 0, %s41
      %s30 = sphi 0, %s37
      %s31 = sphi 0, %s29
      %s32 = sphi 0, %s30
      %s33 = sphi 0, %s31
      %s34 = sphi 0, %s32
      %s42 = sphi 0, %s42
      %s44 = sphi 0, %s42
      %s45 = sphi 0, %s44
      %s59 = sphi 0, %s45
      %s65 = sphi 0, %s67
      %s68 = sphi 0, %s65
      %s69 = sphi 0, %s68
      %s85 = sphi 0, %s69
      %s93 = sphi 0, %s95
      %s96 = sphi 0, %s93
      %s97 = sphi 0, %s96
      %s113 = sphi 0, %s97
      %s119 = sphi 0, %s121
      %s122 = sphi 0, %s119
      %s123 = sphi 0, %s122
      %s139 = sphi 0, %s123
    $region4: #{tpu_custom_call.1} parent=1 // loop_header_branch
      %25 = sbr.rel (%p23) target = $region8
    $region5: #{tpu_custom_call.1} parent=1 // loop_body
      %s27 = ssub.s32 %s22, 1
      %s28 = ssub.s32 %s22, 2
      %s35 = sadd.s32 1, %s30
      %p36 = scmp.ge.s32.totalorder %s35, 4
      %s37 = scalar_select %p36, 0, %s35
      %s38 = sadd.s32 1, %s29
      %s39 = scalar_select %p36, %s38, %s29
      %p40 = scmp.ge.s32.totalorder %s39, 2
      %s41 = scalar_select %p40, 0, %s39
      %s43 = sadd.s32 %s42, 1
      %p46 = scmp.eq.s32.totalorder %s22, 7
      %p47 = scmp.ne.s32.totalorder %s42, %s44
      %p48 = scmp.eq.s32.totalorder %s22, 0
      %p49 = por %p47, %p48
      %p50 = scmp.ne.s32.totalorder %s42, %s44
      %p51 = scmp.eq.s32.totalorder %s27, 7
      %p52 = por %p50, %p51
      %p53 = scmp.ne.s32.totalorder %s44, %s45
      %p54 = scmp.eq.s32.totalorder %s27, 0
      %p55 = por %p53, %p54
      %p56 = scmp.ne.s32.totalorder %s44, %s45
      %p57 = scmp.eq.s32.totalorder %s28, 7
      %p58 = por %p56, %p57
      %p60 = scmp.ne.s32.totalorder %s45, %s59
      %p61 = scmp.eq.s32.totalorder %s28, 0
      %p62 = por %p60, %p61
      %s63 = ssub.s32 %s29, %s41
      %p64 = scmp.eq.s32.totalorder %s63, 0
      %s66 = sadd.s32 %s65, 1
      %s67 = scalar_select %p64, %s65, %s66
      %p70 = pneg %p64
      %p71 = scmp.eq.s32.totalorder %s22, 7
      %p72 = por %p70, %p71
      %p73 = scmp.ne.s32.totalorder %s65, %s68
      %p74 = scmp.eq.s32.totalorder %s22, 0
      %p75 = por %p73, %p74
      %p76 = scmp.ne.s32.totalorder %s65, %s68
      %p77 = scmp.eq.s32.totalorder %s27, 7
      %p78 = por %p76, %p77
      %p79 = scmp.ne.s32.totalorder %s68, %s69
      %p80 = scmp.eq.s32.totalorder %s27, 0
      %p81 = por %p79, %p80
      %p82 = scmp.ne.s32.totalorder %s68, %s69
      %p83 = scmp.eq.s32.totalorder %s28, 7
      %p84 = por %p82, %p83
      %p86 = scmp.ne.s32.totalorder %s69, %s85
      %p87 = scmp.eq.s32.totalorder %s28, 0
      %p88 = por %p86, %p87
      %s89 = ssub.s32 %s30, %s37
      %s90 = ssub.s32 %s29, %s41
      %s91 = sor.u32 %s89, %s90
      %p92 = scmp.eq.s32.totalorder %s91, 0
      %s94 = sadd.s32 %s93, 1
      %s95 = scalar_select %p92, %s93, %s94
      %p98 = pneg %p92
      %p99 = scmp.eq.s32.totalorder %s22, 7
      %p100 = por %p98, %p99
      %p101 = scmp.ne.s32.totalorder %s93, %s96
      %p102 = scmp.eq.s32.totalorder %s22, 0
      %p103 = por %p101, %p102
      %p104 = scmp.ne.s32.totalorder %s93, %s96
      %p105 = scmp.eq.s32.totalorder %s27, 7
      %p106 = por %p104, %p105
      %p107 = scmp.ne.s32.totalorder %s96, %s97
      %p108 = scmp.eq.s32.totalorder %s27, 0
      %p109 = por %p107, %p108
      %p110 = scmp.ne.s32.totalorder %s96, %s97
      %p111 = scmp.eq.s32.totalorder %s28, 7
      %p112 = por %p110, %p111
      %p114 = scmp.ne.s32.totalorder %s97, %s113
      %p115 = scmp.eq.s32.totalorder %s28, 0
      %p116 = por %p114, %p115
      %s117 = ssub.s32 %s29, %s41
      %p118 = scmp.eq.s32.totalorder %s117, 0
      %s120 = sadd.s32 %s119, 1
      %s121 = scalar_select %p118, %s119, %s120
      %p124 = pneg %p118
      %p125 = scmp.eq.s32.totalorder %s22, 7
      %p126 = por %p124, %p125
      %p127 = scmp.ne.s32.totalorder %s119, %s122
      %p128 = scmp.eq.s32.totalorder %s22, 0
      %p129 = por %p127, %p128
      %p130 = scmp.ne.s32.totalorder %s119, %s122
      %p131 = scmp.eq.s32.totalorder %s27, 7
      %p132 = por %p130, %p131
      %p133 = scmp.ne.s32.totalorder %s122, %s123
      %p134 = scmp.eq.s32.totalorder %s27, 0
      %p135 = por %p133, %p134
      %p136 = scmp.ne.s32.totalorder %s122, %s123
      %p137 = scmp.eq.s32.totalorder %s28, 7
      %p138 = por %p136, %p137
      %p140 = scmp.ne.s32.totalorder %s123, %s139
      %p141 = scmp.eq.s32.totalorder %s28, 0
      %p142 = por %p140, %p141
      %p143 = scmp.le.s32.totalorder 1, %s22
      %p144 = scmp.lt.s32.totalorder %s22, 9
      %p145 = pnand %p143, %p144
      %p146 = pneg %p145
      // Predicated region
      $region9: #{tpu_custom_call.1} parent=5 // pred_check
        _
      $region10: #{tpu_custom_call.1} parent=5 // pred_check_branch
        %148 = sbr.rel (%p145) target = $region12
      $region11: #{tpu_custom_call.1} parent=5 // pred_region
        %s149 = ssub.s32 %s22, 1
        // Predicated region
        $region13: #{tpu_custom_call.1} parent=11 // pred_check
          %p150 = pneg %p55
        $region14: #{tpu_custom_call.1} parent=11 // pred_check_branch
          %152 = sbr.rel (%p150) target = $region16
        $region15: #{tpu_custom_call.1} parent=11 // pred_region
          %s154 = ssub.s32 256, 256
          %155 = vsyncadd [#allocation8], %s154
          %s157 = sshll.u32 [#allocation7], 4
          %s158 = int_to_ptr.vmem [resolvable:$true] %s157
          %160 = dma.hbm_to_vmem [thread:$0]  %s1, 256, %s158, [#allocation8]
        $region16: #{tpu_custom_call.1} parent=11 // pred_fallthru
          _
      $region12: #{tpu_custom_call.1} parent=5 // pred_fallthru
        _
      %p161 = scmp.lt.s32.totalorder %s22, 8
      // Predicated region
      $region17: #{tpu_custom_call.1} parent=5 // pred_check
        %p162 = pneg %p161
      $region18: #{tpu_custom_call.1} parent=5 // pred_check_branch
        %164 = sbr.rel (%p162) target = $region20
      $region19: #{tpu_custom_call.1} parent=5 // pred_region
        // Predicated region
        $region21: #{tpu_custom_call.1} parent=19 // pred_check
          %p165 = pneg %p75
        $region22: #{tpu_custom_call.1} parent=19 // pred_check_branch
          %167 = sbr.rel (%p165) target = $region24
        $region23: #{tpu_custom_call.1} parent=19 // pred_region
          %p168 = scmp.lt.s32.totalorder %s29, 1
          %s169 = scalar_select %p168, %s29, 1
          %s170 = scalar_lea.vmem %s2, %s169
        $region24: #{tpu_custom_call.1} parent=19 // pred_fallthru
          _
        // Predicated region
        $region25: #{tpu_custom_call.1} parent=19 // pred_check
          %p171 = pneg %p103
        $region26: #{tpu_custom_call.1} parent=19 // pred_check_branch
          %173 = sbr.rel (%p171) target = $region28
        $region27: #{tpu_custom_call.1} parent=19 // pred_region
          %s174 = sand.u32 %s93, 1
          %s175 = scalar_lea.sflag [#allocation11], %s174
          %s176 = sand.u32 %s93, 1
          %s177 = smul.addr %s176, 256
          %s178 = scalar_lea.vmem [#allocation10], %s177
          %s179 = smul.u32 16, %s29
          %s181 = ssub.s32 4096, 4096
          %182 = vsyncadd %s175, %s181
          %s183 = smul.addr %s179, 2
          %s184 = smul.addr %s30, 64
          %s185 = sadd.s32 %s183, %s184
          %s186 = smul.addr %s185, 128
          %s187 = scalar_lea.hbm %s3, %s186
          %s188 = sshll.u32 %s178, 4
          %s189 = int_to_ptr.vmem [resolvable:$true] %s188
          %194 = dma.hbm_to_vmem [thread:$0]  %s187, 4096, %s189, %s175, 256, 256, 16
        $region28: #{tpu_custom_call.1} parent=19 // pred_fallthru
          _
      $region20: #{tpu_custom_call.1} parent=5 // pred_fallthru
        _
      %p195 = scmp.le.s32.totalorder 1, %s22
      %p196 = scmp.lt.s32.totalorder %s22, 9
      %p197 = pnand %p195, %p196
      %p198 = pneg %p197
      // Predicated region
      $region29: #{tpu_custom_call.1} parent=5 // pred_check
        _
      $region30: #{tpu_custom_call.1} parent=5 // pred_check_branch
        %200 = sbr.rel (%p197) target = $region32
      $region31: #{tpu_custom_call.1} parent=5 // pred_region
        %s201 = ssub.s32 %s22, 1
        // Predicated region
        $region33: #{tpu_custom_call.1} parent=31 // pred_check
          %p202 = pneg %p55
        $region34: #{tpu_custom_call.1} parent=31 // pred_check_branch
          %204 = sbr.rel (%p202) target = $region36
        $region35: #{tpu_custom_call.1} parent=31 // pred_region
          %205 = dma.done [#allocation8], 256
        $region36: #{tpu_custom_call.1} parent=31 // pred_fallthru
          _
        %s206 = sand.u32 %s96, 1
        %s207 = scalar_lea.sflag [#allocation11], %s206
        %s208 = sand.u32 %s96, 1
        %s209 = smul.addr %s208, 256
        %s210 = scalar_lea.vmem [#allocation10], %s209
        // Predicated region
        $region37: #{tpu_custom_call.1} parent=31 // pred_check
          %p211 = pneg %p109
        $region38: #{tpu_custom_call.1} parent=31 // pred_check_branch
          %213 = sbr.rel (%p211) target = $region40
        $region39: #{tpu_custom_call.1} parent=31 // pred_region
          %214 = dma.done %s207, 4096
        $region40: #{tpu_custom_call.1} parent=31 // pred_fallthru
          _
        %p215 = pneg %p55
        %p216 = pneg %p52
        %p217 = scmp.lt.s32.totalorder %s31, 1
        %s218 = scalar_select %p217, %s31, 1
        %s219 = scalar_lea.vmem %s2, %s218
        %p220 = pneg %p81
        %p221 = pneg %p78
        %s222 = sand.u32 %s96, 1
        %s223 = scalar_lea.sflag [#allocation11], %s222
        %s224 = sand.u32 %s96, 1
        %s225 = smul.addr %s224, 256
        %s226 = scalar_lea.vmem [#allocation10], %s225
        %p227 = pneg %p109
        %p228 = pneg %p106
        %p229 = pneg %p135
        %p230 = pneg %p132
        %s231 = sand.u32 %s122, 1
        %s232 = scalar_lea.sflag [#allocation9], %s231
        %s233 = sand.u32 %s122, 1
        %s234 = smul.addr %s233, 8
        %s235 = scalar_lea.vmem [#allocation12], %s234
        %p236 = scmp.lt.s32.totalorder %s31, 1
        %s237 = scalar_select %p236, %s31, 1
        %s238 = scalar_lea.vmem %s2, %s237
        %s239 = smul.u32 16, %s31
        %p240 = scmp.eq.s32.totalorder %s32, 0
        // Predicated region
        $region41: #{tpu_custom_call.1} parent=31 // pred_check
          %p241 = pneg %p240
        $region42: #{tpu_custom_call.1} parent=31 // pred_check_branch
          %243 = sbr.rel (%p241) target = $region44
        $region43: #{tpu_custom_call.1} parent=31 // pred_region
          %s244 = smul.u32 %s31, 128
          %s245 = sshra.s32 %s244, 3
          %s246 = sand.u32 %s244, 7
          %s247 = smul.u32 %s245, 2
          %s248 = smul.addr %s247, 128
          %s249 = scalar_lea.hbm %s4, %s248
          // Predicated region
          $region45: #{tpu_custom_call.1} parent=43 // pred_check
            _
          $region46: #{tpu_custom_call.1} parent=43 // pred_check_branch
            %251 = sbr.rel target = $region48
          $region47: #{tpu_custom_call.1} parent=43 // pred_region
            %252 = sst [smem:[#allocation15]] [#allocation14]
            %253 = sst [smem:[#allocation16]] [#allocation13]
          $region48: #{tpu_custom_call.1} parent=43 // pred_fallthru
            _
          %255 = shalt.err (0)
          %s257 = sshll.u32 [#allocation3], 4
          %s258 = int_to_ptr.vmem [resolvable:$true] %s257
          %260 = dma.hbm_to_vmem [thread:$0]  %s249, 4096, %s258, [#allocation4]
          %v261 = vld [vmem:[%s238] sm:$0x1]
          %v263 = vlaneseq
          %v264 = vshrl.u32 %v263, 7
          %v265 = vsub.s32 0, %v264
          %v266 = vrot.slane %v261, %v265
          %268 = vst [vmem:[#allocation2] sm:$0xff] %v266
        $region44: #{tpu_custom_call.1} parent=31 // pred_fallthru
          _
        %s269 = sld [smem:[#allocation6 + %s32]]
        %s270 = smax.f32 %s269, 0.0
        %s271 = smin.f32 %s270, 1.0
        %v272 = vld [vmem:[#allocation7] sm:$0xff]
        %v273 = vld [vmem:[#allocation7 + $0x8] sm:$0xff]
        %v274 = vld [vmem:[#allocation2] sm:$0xff]
        %v275 = vld [vmem:[%s210] sm:$0xff]
        %v276 = vld [vmem:[%s210 + $0x8] sm:$0xff]
        %v277 = vld [vmem:[%s210 + $0x10] sm:$0xff]
        %v278 = vld [vmem:[%s210 + $0x18] sm:$0xff]
        %v279 = vld [vmem:[%s210 + $0x20] sm:$0xff]
        %v280 = vld [vmem:[%s210 + $0x28] sm:$0xff]
        %v281 = vld [vmem:[%s210 + $0x30] sm:$0xff]
        %v282 = vld [vmem:[%s210 + $0x38] sm:$0xff]
        %v283 = vld [vmem:[%s210 + $0x40] sm:$0xff]
        %v284 = vld [vmem:[%s210 + $0x48] sm:$0xff]
        %v285 = vld [vmem:[%s210 + $0x50] sm:$0xff]
        %v286 = vld [vmem:[%s210 + $0x58] sm:$0xff]
        %v287 = vld [vmem:[%s210 + $0x60] sm:$0xff]
        %v288 = vld [vmem:[%s210 + $0x68] sm:$0xff]
        %v289 = vld [vmem:[%s210 + $0x70] sm:$0xff]
        %v290 = vld [vmem:[%s210 + $0x78] sm:$0xff]
        %v291 = vld [vmem:[%s210 + $0x80] sm:$0xff]
        %v292 = vld [vmem:[%s210 + $0x88] sm:$0xff]
        %v293 = vld [vmem:[%s210 + $0x90] sm:$0xff]
        %v294 = vld [vmem:[%s210 + $0x98] sm:$0xff]
        %v295 = vld [vmem:[%s210 + $0xa0] sm:$0xff]
        %v296 = vld [vmem:[%s210 + $0xa8] sm:$0xff]
        %v297 = vld [vmem:[%s210 + $0xb0] sm:$0xff]
        %v298 = vld [vmem:[%s210 + $0xb8] sm:$0xff]
        %v299 = vld [vmem:[%s210 + $0xc0] sm:$0xff]
        %v300 = vld [vmem:[%s210 + $0xc8] sm:$0xff]
        %v301 = vld [vmem:[%s210 + $0xd0] sm:$0xff]
        %v302 = vld [vmem:[%s210 + $0xd8] sm:$0xff]
        %v303 = vld [vmem:[%s210 + $0xe0] sm:$0xff]
        %v304 = vld [vmem:[%s210 + $0xe8] sm:$0xff]
        %v305 = vld [vmem:[%s210 + $0xf0] sm:$0xff]
        %v306 = vld [vmem:[%s210 + $0xf8] sm:$0xff]
        %307 = vmatprep.subr.mxu0 %v306
        %308 = vmatpush1.xpose.msra.mxu0 %v305
        %309 = vmatprep.subr.mxu0 %v304
        %310 = vmatpush1.xpose.msra.mxu0 %v303
        %311 = vmatprep.subr.mxu0 %v302
        %312 = vmatpush1.xpose.msra.mxu0 %v301
        %313 = vmatprep.subr.mxu0 %v300
        %314 = vmatpush1.xpose.msra.mxu0 %v299
        %315 = vmatprep.subr.mxu0 %v298
        %316 = vmatpush1.xpose.msra.mxu0 %v297
        %317 = vmatprep.subr.mxu0 %v296
        %318 = vmatpush1.xpose.msra.mxu0 %v295
        %319 = vmatprep.subr.mxu0 %v294
        %320 = vmatpush1.xpose.msra.mxu0 %v293
        %321 = vmatprep.subr.mxu0 %v292
        %322 = vmatpush1.xpose.msra.mxu0 %v291
        %323 = vmatprep.subr.mxu0 %v290
        %324 = vmatpush1.xpose.msra.mxu0 %v289
        %325 = vmatprep.subr.mxu0 %v288
        %326 = vmatpush1.xpose.msra.mxu0 %v287
        %327 = vmatprep.subr.mxu0 %v286
        %328 = vmatpush1.xpose.msra.mxu0 %v285
        %329 = vmatprep.subr.mxu0 %v284
        %330 = vmatpush1.xpose.msra.mxu0 %v283
        %331 = vmatprep.subr.mxu0 %v282
        %332 = vmatpush1.xpose.msra.mxu0 %v281
        %333 = vmatprep.subr.mxu0 %v280
        %334 = vmatpush1.xpose.msra.mxu0 %v279
        %335 = vmatprep.subr.mxu0 %v278
        %336 = vmatpush1.xpose.msra.mxu0 %v277
        %337 = vmatprep.subr.mxu0 %v276
        %338 = vmatpush1.xpose.msra.mxu0 %v275
        %339 = vmatprep.subr.mxu0 0.0
        %340 = vmatpush2.xpose.msra.mxu0 0.0
        %341 = vmatprep.subr.mxu0 0.0
        %342 = vmatpush2.xpose.msra.mxu0 0.0
        %343 = vmatprep.subr.mxu0 0.0
        %344 = vmatpush2.xpose.msra.mxu0 0.0
        %345 = vmatprep.subr.mxu0 0.0
        %346 = vmatpush2.xpose.msra.mxu0 0.0
        %347 = vmatprep.subr.mxu0 0.0
        %348 = vmatpush2.xpose.msra.mxu0 0.0
        %349 = vmatprep.subr.mxu0 0.0
        %350 = vmatpush2.xpose.msra.mxu0 0.0
        %351 = vmatprep.subr.mxu0 0.0
        %352 = vmatpush2.xpose.msra.mxu0 0.0
        %353 = vmatprep.subr.mxu0 0.0
        %354 = vmatpush2.xpose.msra.mxu0 0.0
        %355 = vmatprep.subr.mxu0 0.0
        %356 = vmatpush2.xpose.msra.mxu0 0.0
        %357 = vmatprep.subr.mxu0 0.0
        %358 = vmatpush2.xpose.msra.mxu0 0.0
        %359 = vmatprep.subr.mxu0 0.0
        %360 = vmatpush2.xpose.msra.mxu0 0.0
        %361 = vmatprep.subr.mxu0 0.0
        %362 = vmatpush2.xpose.msra.mxu0 0.0
        %363 = vmatprep.subr.mxu0 0.0
        %364 = vmatpush2.xpose.msra.mxu0 0.0
        %365 = vmatprep.subr.mxu0 0.0
        %366 = vmatpush2.xpose.msra.mxu0 0.0
        %367 = vmatprep.subr.mxu0 0.0
        %368 = vmatpush2.xpose.msra.mxu0 0.0
        %369 = vmatprep.subr.mxu0 0.0
        %370 = vmatpush2.xpose.msra.mxu0 0.0
        %371 = vmatprep.mubr.f32.mxu0 %v273
        %372 = vmatmul.mubr.f32.gmra.mxu0 %v272
        %v373 = vpop.f32.mrf.mxu0
        %v374 = vadd.f32 0.0, %v373
        %v375 = vpop.f32.mrf.mxu0
        %376 = vdwg.mxu0
        %v377 = vstv %s271
        %v378 = vmul.f32 %v377, %v374
        %v379 = vadd.f32 %v274, %v378
        %380 = vst [vmem:[#allocation2] sm:$0xff] %v379
        %p381 = scmp.eq.s32.totalorder %s32, 3
        // Predicated region
        $region49: #{tpu_custom_call.1} parent=31 // pred_check
          %p382 = pneg %p381
        $region50: #{tpu_custom_call.1} parent=31 // pred_check_branch
          %384 = sbr.rel (%p382) target = $region52
        $region51: #{tpu_custom_call.1} parent=31 // pred_region
          %s385 = smul.u32 %s31, 128
          %s386 = smul.u32 8, 16
          %s387 = smul.u32 %s386, 2
          %s388 = sshll.u32 %s387, 4
          %389 = dma.done [#allocation4], %s388
          %v390 = vld [vmem:[#allocation2] sm:$0xff]
          %v391 = vld [vmem:[#allocation7] sm:$0xff]
          %v392 = vld [vmem:[#allocation7 + $0x8] sm:$0xff]
          %v393 = vld [vmem:[#allocation3] sm:$0xff]
          %v394 = vld [vmem:[#allocation3 + $0x8] sm:$0xff]
          %v395 = vld [vmem:[#allocation3 + $0x10] sm:$0xff]
          %v396 = vld [vmem:[#allocation3 + $0x18] sm:$0xff]
          %v397 = vld [vmem:[#allocation3 + $0x20] sm:$0xff]
          %v398 = vld [vmem:[#allocation3 + $0x28] sm:$0xff]
          %v399 = vld [vmem:[#allocation3 + $0x30] sm:$0xff]
          %v400 = vld [vmem:[#allocation3 + $0x38] sm:$0xff]
          %v401 = vld [vmem:[#allocation3 + $0x40] sm:$0xff]
          %v402 = vld [vmem:[#allocation3 + $0x48] sm:$0xff]
          %v403 = vld [vmem:[#allocation3 + $0x50] sm:$0xff]
          %v404 = vld [vmem:[#allocation3 + $0x58] sm:$0xff]
          %v405 = vld [vmem:[#allocation3 + $0x60] sm:$0xff]
          %v406 = vld [vmem:[#allocation3 + $0x68] sm:$0xff]
          %v407 = vld [vmem:[#allocation3 + $0x70] sm:$0xff]
          %v408 = vld [vmem:[#allocation3 + $0x78] sm:$0xff]
          %v409 = vld [vmem:[#allocation3 + $0x80] sm:$0xff]
          %v410 = vld [vmem:[#allocation3 + $0x88] sm:$0xff]
          %v411 = vld [vmem:[#allocation3 + $0x90] sm:$0xff]
          %v412 = vld [vmem:[#allocation3 + $0x98] sm:$0xff]
          %v413 = vld [vmem:[#allocation3 + $0xa0] sm:$0xff]
          %v414 = vld [vmem:[#allocation3 + $0xa8] sm:$0xff]
          %v415 = vld [vmem:[#allocation3 + $0xb0] sm:$0xff]
          %v416 = vld [vmem:[#allocation3 + $0xb8] sm:$0xff]
          %v417 = vld [vmem:[#allocation3 + $0xc0] sm:$0xff]
          %v418 = vld [vmem:[#allocation3 + $0xc8] sm:$0xff]
          %v419 = vld [vmem:[#allocation3 + $0xd0] sm:$0xff]
          %v420 = vld [vmem:[#allocation3 + $0xd8] sm:$0xff]
          %v421 = vld [vmem:[#allocation3 + $0xe0] sm:$0xff]
          %v422 = vld [vmem:[#allocation3 + $0xe8] sm:$0xff]
          %v423 = vld [vmem:[#allocation3 + $0xf0] sm:$0xff]
          %v424 = vld [vmem:[#allocation3 + $0xf8] sm:$0xff]
          %425 = vmatprep.subr.mxu0 %v424
          %426 = vmatpush1.xpose.msra.mxu0 %v423
          %427 = vmatprep.subr.mxu0 %v422
          %428 = vmatpush1.xpose.msra.mxu0 %v421
          %429 = vmatprep.subr.mxu0 %v420
          %430 = vmatpush1.xpose.msra.mxu0 %v419
          %431 = vmatprep.subr.mxu0 %v418
          %432 = vmatpush1.xpose.msra.mxu0 %v417
          %433 = vmatprep.subr.mxu0 %v416
          %434 = vmatpush1.xpose.msra.mxu0 %v415
          %435 = vmatprep.subr.mxu0 %v414
          %436 = vmatpush1.xpose.msra.mxu0 %v413
          %437 = vmatprep.subr.mxu0 %v412
          %438 = vmatpush1.xpose.msra.mxu0 %v411
          %439 = vmatprep.subr.mxu0 %v410
          %440 = vmatpush1.xpose.msra.mxu0 %v409
          %441 = vmatprep.subr.mxu0 %v408
          %442 = vmatpush1.xpose.msra.mxu0 %v407
          %443 = vmatprep.subr.mxu0 %v406
          %444 = vmatpush1.xpose.msra.mxu0 %v405
          %445 = vmatprep.subr.mxu0 %v404
          %446 = vmatpush1.xpose.msra.mxu0 %v403
          %447 = vmatprep.subr.mxu0 %v402
          %448 = vmatpush1.xpose.msra.mxu0 %v401
          %449 = vmatprep.subr.mxu0 %v400
          %450 = vmatpush1.xpose.msra.mxu0 %v399
          %451 = vmatprep.subr.mxu0 %v398
          %452 = vmatpush1.xpose.msra.mxu0 %v397
          %453 = vmatprep.subr.mxu0 %v396
          %454 = vmatpush1.xpose.msra.mxu0 %v395
          %455 = vmatprep.subr.mxu0 %v394
          %456 = vmatpush1.xpose.msra.mxu0 %v393
          %457 = vmatprep.subr.mxu0 0.0
          %458 = vmatpush2.xpose.msra.mxu0 0.0
          %459 = vmatprep.subr.mxu0 0.0
          %460 = vmatpush2.xpose.msra.mxu0 0.0
          %461 = vmatprep.subr.mxu0 0.0
          %462 = vmatpush2.xpose.msra.mxu0 0.0
          %463 = vmatprep.subr.mxu0 0.0
          %464 = vmatpush2.xpose.msra.mxu0 0.0
          %465 = vmatprep.subr.mxu0 0.0
          %466 = vmatpush2.xpose.msra.mxu0 0.0
          %467 = vmatprep.subr.mxu0 0.0
          %468 = vmatpush2.xpose.msra.mxu0 0.0
          %469 = vmatprep.subr.mxu0 0.0
          %470 = vmatpush2.xpose.msra.mxu0 0.0
          %471 = vmatprep.subr.mxu0 0.0
          %472 = vmatpush2.xpose.msra.mxu0 0.0
          %473 = vmatprep.subr.mxu0 0.0
          %474 = vmatpush2.xpose.msra.mxu0 0.0
          %475 = vmatprep.subr.mxu0 0.0
          %476 = vmatpush2.xpose.msra.mxu0 0.0
          %477 = vmatprep.subr.mxu0 0.0
          %478 = vmatpush2.xpose.msra.mxu0 0.0
          %479 = vmatprep.subr.mxu0 0.0
          %480 = vmatpush2.xpose.msra.mxu0 0.0
          %481 = vmatprep.subr.mxu0 0.0
          %482 = vmatpush2.xpose.msra.mxu0 0.0
          %483 = vmatprep.subr.mxu0 0.0
          %484 = vmatpush2.xpose.msra.mxu0 0.0
          %485 = vmatprep.subr.mxu0 0.0
          %486 = vmatpush2.xpose.msra.mxu0 0.0
          %487 = vmatprep.subr.mxu0 0.0
          %488 = vmatpush2.xpose.msra.mxu0 0.0
          %489 = vmatprep.mubr.f32.mxu0 %v392
          %490 = vmatmul.mubr.f32.gmra.mxu0 %v391
          %v491 = vpop.f32.mrf.mxu0
          %v492 = vadd.f32 0.0, %v491
          %v493 = vpop.f32.mrf.mxu0
          %494 = vdwg.mxu0
          %v495 = vadd.f32 %v390, %v492
          %496 = vst [vmem:[#allocation2] sm:$0xff] %v495
          %v497 = vld [vmem:[#allocation2] sm:$0xff]
          %498 = vst [vmem:[%s235] sm:$0xff] %v497
        $region52: #{tpu_custom_call.1} parent=31 // pred_fallthru
          _
        %s499 = sand.u32 %s122, 1
        %s500 = scalar_lea.sflag [#allocation9], %s499
        %s501 = sand.u32 %s122, 1
        %s502 = smul.addr %s501, 8
        %s503 = scalar_lea.vmem [#allocation12], %s502
        // Predicated region
        $region53: #{tpu_custom_call.1} parent=31 // pred_check
          %p504 = pneg %p132
        $region54: #{tpu_custom_call.1} parent=31 // pred_check_branch
          %506 = sbr.rel (%p504) target = $region56
        $region55: #{tpu_custom_call.1} parent=31 // pred_region
          %s508 = ssub.s32 128, 128
          %509 = vsyncadd %s500, %s508
          %s510 = smul.addr %s31, 128
          %s511 = scalar_lea.hbm %s5, %s510
          %s513 = sshll.u32 %s503, 4
          %s514 = int_to_ptr.vmem [resolvable:$true] %s513
          %516 = dma.vmem_to_hbm [thread:$0]  %s514, 128, %s511, %s500
        $region56: #{tpu_custom_call.1} parent=31 // pred_fallthru
          _
      $region32: #{tpu_custom_call.1} parent=5 // pred_fallthru
        _
      %p517 = scmp.le.s32.totalorder 2, %s22
      // Predicated region
      $region57: #{tpu_custom_call.1} parent=5 // pred_check
        %p518 = pneg %p517
      $region58: #{tpu_custom_call.1} parent=5 // pred_check_branch
        %520 = sbr.rel (%p518) target = $region60
      $region59: #{tpu_custom_call.1} parent=5 // pred_region
        %s521 = ssub.s32 %s22, 2
        // Predicated region
        $region61: #{tpu_custom_call.1} parent=59 // pred_check
          %p522 = pneg %p138
        $region62: #{tpu_custom_call.1} parent=59 // pred_check_branch
          %524 = sbr.rel (%p522) target = $region64
        $region63: #{tpu_custom_call.1} parent=59 // pred_region
          %s525 = sand.u32 %s123, 1
          %s526 = scalar_lea.sflag [#allocation9], %s525
          %s527 = sand.u32 %s123, 1
          %s528 = smul.addr %s527, 8
          %s529 = scalar_lea.vmem [#allocation12], %s528
          %530 = dma.done %s526, 128
        $region64: #{tpu_custom_call.1} parent=59 // pred_fallthru
          _
      $region60: #{tpu_custom_call.1} parent=5 // pred_fallthru
        _
    $region6: #{tpu_custom_call.1} parent=1 // loop_footer
      %s26 = sadd.s32 1, %s22
    $region7: #{tpu_custom_call.1} parent=1 // loop_footer_branch
      %21 = sbr.rel target = $region3
    $region8: #{tpu_custom_call.1} parent=1 // loop_exit
      _
    %531 = vsyncpa [#allocation8], 1
    %s532 = scalar_lea.sflag [#allocation8], 1
    %533 = vsyncpa %s532, 1
    %534 = vsyncpa [#allocation11], 1
    %s535 = scalar_lea.sflag [#allocation11], 1
    %536 = vsyncpa %s535, 1
    %537 = vsyncpa [#allocation9], 1
    %s538 = scalar_lea.sflag [#allocation9], 1
    %539 = vsyncpa %s538, 1
  %540 = vsyncmov [#allocation4]
  %s541 = vpop.sfrf %540
  %p542 = scmp.eq.s32.totalorder %s541, 0
  %p543 = pneg %p542
  %545 = shalt.err (%p543)

</llo_original>
